<compile_context>
chip_gen: v5e
topology: v5e:2x2
jax: 0.10.0
libtpu: 0.0.40
codegen_flags: <defaults>
</compile_context>

<pallas_src>
import functools

import jax
import jax.numpy as jnp
from jax.experimental import pallas as pl
from jax.experimental.pallas import tpu as pltpu


def _round_up(a, b):
    return (a + b - 1) // b * b


def _label_smooth_kernel(x_ref, t_ref, o_ref, *, smoothing, n_rows):
    """One grid step = one row tile. Writes a single partial-sum scalar."""
    x = x_ref[...].astype(jnp.float32)                      # (tm, C) f32
    tm, C = x.shape

    # Stable log-softmax pieces (all reductions along the lane/class axis).
    m = jnp.max(x, axis=-1, keepdims=True)                  # (tm, 1)
    z = x - m                                               # (tm, C)
    lse = jnp.log(jnp.sum(jnp.exp(z), axis=-1, keepdims=True))  # (tm, 1)
    sum_z = jnp.sum(z, axis=-1, keepdims=True)              # (tm, 1)

    # z at the target class, without materializing one-hot weights.
    tgt = t_ref[...]                                        # (tm, 1) int32
    col = jax.lax.broadcasted_iota(jnp.int32, (tm, C), 1)
    z_tgt = jnp.sum(jnp.where(col == tgt, z, 0.0), axis=-1, keepdims=True)

    # sum_c weight_c * log_prob_c
    #   = off * (sum_z - C*lse) + ((1-s) - off) * (z_tgt - lse)
    off = smoothing / (C - 1.0)
    delta = (1.0 - smoothing) - off
    row_loss = -(off * (sum_z - C * lse) + delta * (z_tgt - lse))   # (tm, 1)

    # Mask rows beyond the true row count (wrapper-side padding).
    row0 = pl.program_id(0) * tm
    rows = jax.lax.broadcasted_iota(jnp.int32, (tm, 1), 0) + row0
    row_loss = jnp.where(rows < n_rows, row_loss, 0.0)

    o_ref[...] = jnp.sum(row_loss).reshape(1, 1, 1)


def label_smooth_loss(x, target, smoothing=0.0, *, tm=1024):
    """x: (N, C) float logits (f32 or bf16); target: (N,) ints. Returns scalar."""
    N, C = x.shape
    itemsize = jnp.dtype(x.dtype).itemsize

    # Row tile: as large as possible, multiple of 8, capped by N and by a VMEM
    # budget (double-buffered input + ~6 f32 (tm, C) temporaries). The 48 MiB
    # cap keeps the kernel comfortably inside v7x's 64 MiB physical VMEM.
    tm_eff = min(_round_up(max(tm, 8), 8), _round_up(N, 8))

    def vmem_estimate(t):
        return 2 * t * C * itemsize + 6 * t * C * 4 + (1 << 20)

    while tm_eff > 8 and vmem_estimate(tm_eff) > (48 << 20):
        tm_eff //= 2
    tm_eff = max(8, _round_up(tm_eff, 8))

    N_pad = _round_up(N, tm_eff)
    num_tiles = N_pad // tm_eff

    t2d = target.astype(jnp.int32).reshape(N, 1)
    if N_pad != N:
        x = jnp.pad(x, ((0, N_pad - N), (0, 0)))
        t2d = jnp.pad(t2d, ((0, N_pad - N), (0, 0)))

    kernel = functools.partial(
        _label_smooth_kernel, smoothing=float(smoothing), n_rows=N
    )

    partials = pl.pallas_call(
        kernel,
        out_shape=jax.ShapeDtypeStruct((num_tiles, 1, 1), jnp.float32),
        grid_spec=pltpu.PrefetchScalarGridSpec(
            num_scalar_prefetch=0,
            grid=(num_tiles,),
            in_specs=[
                pl.BlockSpec((tm_eff, C), lambda i: (i, 0)),
                pl.BlockSpec((tm_eff, 1), lambda i: (i, 0)),
            ],
            out_specs=pl.BlockSpec((1, 1, 1), lambda i: (i, 0, 0)),
        ),
        compiler_params=pltpu.CompilerParams(
            dimension_semantics=("parallel",),
            vmem_limit_bytes=int(
                min(max(vmem_estimate(tm_eff), 4 << 20), 56 << 20)
            ),
        ),
    )(x, t2d)

    # Tiny final reduction over per-tile partial sums (done in plain JAX).
    return jnp.sum(partials) / jnp.float32(N)


def _reference(x, target, smoothing):
    # Pure-JAX reference mirroring the PyTorch module.
    log_prob = jax.nn.log_softmax(x.astype(jnp.float32), axis=-1)
    C = x.shape[-1]
    weight = jnp.full(x.shape, smoothing / (C - 1.0), dtype=jnp.float32)
    one_hot = jax.nn.one_hot(target, C, dtype=jnp.float32)
    weight = weight * (1.0 - one_hot) + one_hot * (1.0 - smoothing)
    return jnp.mean(jnp.sum(-weight * log_prob, axis=-1))


if __name__ == "__main__":
    key = jax.random.PRNGKey(0)
    kx, kt, kx2, kt2 = jax.random.split(key, 4)

    smoothing = 0.1

    # Case 1: f32 logits, N divisible by the chosen tile.
    N1, C1 = 16, 128
    x1 = jax.random.normal(kx, (N1, C1), dtype=jnp.float32)
    t1 = jax.random.randint(kt, (N1,), 0, C1, dtype=jnp.int32)
    loss1 = jax.block_until_ready(label_smooth_loss(x1, t1, smoothing))
    ref1 = _reference(x1, t1, smoothing)
    assert jnp.allclose(loss1, ref1, atol=1e-5, rtol=1e-5), (loss1, ref1)

    # Case 2: N not a multiple of the tile (exercises in-kernel row masking).
    N2, C2 = 20, 128
    x2 = jax.random.normal(kx2, (N2, C2), dtype=jnp.float32)
    t2 = jax.random.randint(kt2, (N2,), 0, C2, dtype=jnp.int32)
    loss2 = jax.block_until_ready(label_smooth_loss(x2, t2, smoothing, tm=8))
    ref2 = _reference(x2, t2, smoothing)
    assert jnp.allclose(loss2, ref2, atol=1e-5, rtol=1e-5), (loss2, ref2)

    # Case 3: bf16 logits at the boundary (f32 math in-kernel).
    x3 = x1.astype(jnp.bfloat16)
    loss3 = jax.block_until_ready(label_smooth_loss(x3, t1, smoothing))
    ref3 = _reference(x3, t1, smoothing)
    assert jnp.allclose(loss3, ref3, atol=1e-4, rtol=1e-4), (loss3, ref3)

    print("KERNEL_OK")
</pallas_src>

<mosaic_0001>
module attributes {stable_mosaic.version = 11 : i64} {
  func.func @_label_smooth_kernel(%arg0: i32, %arg1: memref<16x128xf32, #tpu.memory_space<vmem>>, %arg2: memref<16x1xi32, #tpu.memory_space<vmem>>, %arg3: memref<1x1x1xf32, #tpu.memory_space<vmem>>) attributes {dimension_semantics = [#tpu.dimension_semantics<parallel>], iteration_bounds = array<i64: 1>, scalar_prefetch = 0 : i64, scratch_operands = 0 : i64, tpu.core_type = #tpu.core_type<tc>, window_params = [{transform_indices = @transform_0, window_bounds = array<i64: 16, 128>}, {transform_indices = @transform_1, window_bounds = array<i64: 16, 1>}, {transform_indices = @transform_2, window_bounds = array<i64: 1, 1, 1>}]} {
    %c0 = arith.constant 0 : index
    %c0_0 = arith.constant 0 : index
    %0 = vector.load %arg1[%c0, %c0_0] : memref<16x128xf32, #tpu.memory_space<vmem>>, vector<16x128xf32>
    %cst = arith.constant dense<0xFF800000> : vector<16xf32>
    %1 = vector.multi_reduction <maximumf>, %0, %cst [1] : vector<16x128xf32> to vector<16xf32>
    %2 = vector.shape_cast %1 : vector<16xf32> to vector<16x1xf32>
    %3 = vector.broadcast %2 : vector<16x1xf32> to vector<16x128xf32>
    %4 = arith.subf %0, %3 : vector<16x128xf32>
    %5 = math.exp %4 : vector<16x128xf32>
    %cst_1 = arith.constant dense<0.000000e+00> : vector<16xf32>
    %6 = vector.multi_reduction <add>, %5, %cst_1 [1] : vector<16x128xf32> to vector<16xf32>
    %7 = vector.shape_cast %6 : vector<16xf32> to vector<16x1xf32>
    %8 = math.log %7 : vector<16x1xf32>
    %cst_2 = arith.constant dense<0.000000e+00> : vector<16xf32>
    %9 = vector.multi_reduction <add>, %4, %cst_2 [1] : vector<16x128xf32> to vector<16xf32>
    %10 = vector.shape_cast %9 : vector<16xf32> to vector<16x1xf32>
    %c0_3 = arith.constant 0 : index
    %c0_4 = arith.constant 0 : index
    %11 = vector.load %arg2[%c0_3, %c0_4] : memref<16x1xi32, #tpu.memory_space<vmem>>, vector<16x1xi32>
    %12 = tpu.iota {dimensions = array<i32: 1>} : vector<16x128xi32>
    %13 = vector.broadcast %11 : vector<16x1xi32> to vector<16x128xi32>
    %14 = arith.cmpi eq, %12, %13 : vector<16x128xi32>
    %cst_5 = arith.constant 0.000000e+00 : f32
    %15 = vector.broadcast %cst_5 : f32 to vector<16x128xf32>
    %16 = arith.select %14, %4, %15 : vector<16x128xi1>, vector<16x128xf32>
    %cst_6 = arith.constant dense<0.000000e+00> : vector<16xf32>
    %17 = vector.multi_reduction <add>, %16, %cst_6 [1] : vector<16x128xf32> to vector<16xf32>
    %18 = vector.shape_cast %17 : vector<16xf32> to vector<16x1xf32>
    %cst_7 = arith.constant 1.280000e+02 : f32
    %19 = vector.broadcast %cst_7 : f32 to vector<16x1xf32>
    %20 = arith.mulf %19, %8 : vector<16x1xf32>
    %21 = arith.subf %10, %20 : vector<16x1xf32>
    %cst_8 = arith.constant 7.87401571E-4 : f32
    %22 = vector.broadcast %cst_8 : f32 to vector<16x1xf32>
    %23 = arith.mulf %22, %21 : vector<16x1xf32>
    %24 = arith.subf %18, %8 : vector<16x1xf32>
    %cst_9 = arith.constant 0.899212599 : f32
    %25 = vector.broadcast %cst_9 : f32 to vector<16x1xf32>
    %26 = arith.mulf %25, %24 : vector<16x1xf32>
    %27 = arith.addf %23, %26 : vector<16x1xf32>
    %cst_10 = arith.constant 0.000000e+00 : f32
    %28 = vector.broadcast %cst_10 : f32 to vector<16x1xf32>
    %29 = arith.subf %28, %27 : vector<16x1xf32>
    %c16_i32 = arith.constant 16 : i32
    %30 = arith.muli %arg0, %c16_i32 : i32
    %31 = tpu.iota {dimensions = array<i32: 0>} : vector<16x1xi32>
    %32 = vector.broadcast %30 : i32 to vector<16x1xi32>
    %33 = arith.addi %31, %32 : vector<16x1xi32>
    %c16_i32_11 = arith.constant 16 : i32
    %34 = vector.broadcast %c16_i32_11 : i32 to vector<16x1xi32>
    %35 = arith.cmpi slt, %33, %34 : vector<16x1xi32>
    %cst_12 = arith.constant 0.000000e+00 : f32
    %36 = vector.broadcast %cst_12 : f32 to vector<16x1xf32>
    %37 = arith.select %35, %29, %36 : vector<16x1xi1>, vector<16x1xf32>
    %38 = vector.shape_cast %37 : vector<16x1xf32> to vector<1x16x1xf32>
    %cst_13 = arith.constant dense<0.000000e+00> : vector<1xf32>
    %39 = vector.multi_reduction <add>, %38, %cst_13 [1, 2] : vector<1x16x1xf32> to vector<1xf32>
    %40 = vector.shape_cast %39 : vector<1xf32> to vector<1x1x1xf32>
    %41 = vector.extract %40[0, 0, 0] : f32 from vector<1x1x1xf32>
    %42 = vector.broadcast %41 : f32 to vector<1x1x1xf32>
    %c0_14 = arith.constant 0 : index
    %c0_15 = arith.constant 0 : index
    %c0_16 = arith.constant 0 : index
    %43 = vector.load %arg3[%c0_14, %c0_15, %c0_16] : memref<1x1x1xf32, #tpu.memory_space<vmem>>, vector<1x1x1xf32>
    tpu.vector_store %arg3[%c0_14, %c0_15, %c0_16], %42 {strides = array<i32>} : memref<1x1x1xf32, #tpu.memory_space<vmem>>, vector<1x1x1xf32>,
    return
  }
  func.func @transform_0(%arg0: i32) -> (i32, i32) {
    %c0_i32 = arith.constant 0 : i32
    %c0_i32_0 = arith.constant 0 : i32
    return %arg0, %c0_i32 : i32, i32
  }
  func.func @transform_1(%arg0: i32) -> (i32, i32) {
    %c0_i32 = arith.constant 0 : i32
    %c0_i32_0 = arith.constant 0 : i32
    return %arg0, %c0_i32 : i32, i32
  }
  func.func @transform_2(%arg0: i32) -> (i32, i32, i32) {
    %c0_i32 = arith.constant 0 : i32
    %c0_i32_0 = arith.constant 0 : i32
    %c0_i32_1 = arith.constant 0 : i32
    return %arg0, %c0_i32, %c0_i32_0 : i32, i32, i32
  }
}

</mosaic_0001>

<llo_original>
// kernel: tpu_custom_call.1
$region0: #{tpu_custom_call.1}
  #allocation0 [shape = 'u32[]', space=smem, size = 0x4, offset = 0x4, fixed_abs, tag = 'smem constant byte address 0x4 - core index']
  #allocation1 [shape = 'u32[72,128]{1,0:T(1,128)}', space=vmem, size = 0x9000, scoped, tag = 'internal scratch']
  %s0 = inlined_call_operand.vmem [shape: f32[16,128], index: 0, kind: input, shape index: {}]
  %s1 = inlined_call_operand.vmem [shape: s32[16,1], index: 1, kind: input, shape index: {}]
  %s2 = inlined_call_operand.hbm [shape: f32[1,1,1], index: 2, kind: output, shape index: {}]
  %s3 = sld [smem:[#allocation0]]
  $region18: #{tpu_custom_call.1} parent=0
    _
  %s5 = ssub.s32 1, %s3
  %s6 = scalar_select 0, %s5, %s3
  $region1: #{tpu_custom_call.1} parent=0
    #allocation2 [shape = 'u8[512]{0}', space=vmem, size = 0x400, scoped, tag = 'output window, operand 0, single buffered']
    #allocation3 [shape = 's32[1]{0}', space=sflag, size = 0x4, scoped, tag = 'scoped memory for tpu_custom_call.1']
    %7 = vsyncpa [#allocation3], 0
    // Predicated region
    $region2: #{tpu_custom_call.1} parent=1 // pred_check
      _
    $region3: #{tpu_custom_call.1} parent=1 // pred_check_branch
      %9 = sbr.rel (0) target = $region5
    $region4: #{tpu_custom_call.1} parent=1 // pred_region
      _
    $region5: #{tpu_custom_call.1} parent=1 // pred_fallthru
      _
    // Predicated region
    $region6: #{tpu_custom_call.1} parent=1 // pred_check
      _
    $region7: #{tpu_custom_call.1} parent=1 // pred_check_branch
      %11 = sbr.rel (0) target = $region9
    $region8: #{tpu_custom_call.1} parent=1 // pred_region
      _
    $region9: #{tpu_custom_call.1} parent=1 // pred_fallthru
      _
    %v12 = vld [vmem:[%s0] sm:$0xff]
    %v13 = vld [vmem:[%s0 + $0x8] sm:$0xff]
    %14 = vmax.xlane.f32.xlu0 %v12
    %v15 = vpop.xlane.xlu0 %14
    %16 = vmax.xlane.f32.xlu0 %v13
    %v17 = vpop.xlane.xlu0 %16
    %v18 = vsub.f32 %v12, %v15
    %v19 = vsub.f32 %v13, %v17
    %v20 = vmul.f32 %v18, 1.442695
    %v21 = vpow.pop %v20
    %v22 = vmul.f32 %v19, 1.442695
    %v23 = vpow.pop %v22
    %24 = vadd.xlane.f32.xlu0 %v21
    %v25 = vpop.xlane.xlu0 %24
    %26 = vadd.xlane.f32.xlu0 %v23
    %v27 = vpop.xlane.xlu0 %26
    %v28 = vlog2.pop %v25
    %v29 = vmul.f32 %v28, 0.6931472
    %v30 = vlog2.pop %v27
    %v31 = vmul.f32 %v30, 0.6931472
    %32 = vadd.xlane.f32.xlu0 %v18
    %v33 = vpop.xlane.xlu0 %32
    %34 = vadd.xlane.f32.xlu0 %v19
    %v35 = vpop.xlane.xlu0 %34
    %v36 = vld [vmem:[%s1] sm:$0xff]
    %v37 = vld [vmem:[%s1 + $0x8] sm:$0xff]
    %v38 = vlaneseq
    %v39 = vand.u32 %v38, 127
    %40 = vset.pattern.permute.xlu0 0
    %41 = vperm.xlu0 %40, %v36
    %v42 = vpop.permute.xlu0 %41
    %43 = vset.pattern.permute.xlu0 0
    %44 = vperm.xlu0 %43, %v37
    %v45 = vpop.permute.xlu0 %44
    %vm46 = vcmp.eq.s32.totalorder %v39, %v42
    %vm47 = vcmp.eq.s32.totalorder %v39, %v45
    %v48 = vsel %vm46, %v18, 0.0
    %v49 = vsel %vm47, %v19, 0.0
    %50 = vadd.xlane.f32.xlu0 %v48
    %v51 = vpop.xlane.xlu0 %50
    %52 = vadd.xlane.f32.xlu0 %v49
    %v53 = vpop.xlane.xlu0 %52
    %v54 = vmul.f32 %v29, 128.0
    %v55 = vmul.f32 %v31, 128.0
    %v56 = vsub.f32 %v33, %v54
    %v57 = vsub.f32 %v35, %v55
    %v58 = vmul.f32 %v56, 0.0007874016
    %v59 = vmul.f32 %v57, 0.0007874016
    %v60 = vsub.f32 %v51, %v29
    %v61 = vsub.f32 %v53, %v31
    %v62 = vmul.f32 %v60, 0.8992126
    %v63 = vmul.f32 %v61, 0.8992126
    %v64 = vadd.f32 %v58, %v62
    %v65 = vadd.f32 %v59, %v63
    %v66 = vsub.f32 0.0, %v64
    %v67 = vsub.f32 0.0, %v65
    %s68 = smul.u32 0, 16
    %v69 = vlaneseq
    %v70 = vshrl.u32 %v69, 7
    %v71 = vadd.s32 %v70, 8
    %v72 = vstv %s68
    %v73 = vadd.s32 %v70, %v72
    %v74 = vadd.s32 %v71, %v72
    %vm75 = vcmp.lt.s32.totalorder %v73, 16
    %vm76 = vcmp.lt.s32.totalorder %v74, 16
    %v77 = vsel %vm75, %v66, 0.0
    %v78 = vsel %vm76, %v67, 0.0
    %vm79 = vcmask 7168
    %v80 = vsel %vm79, %v77, 0.0
    %v81 = vsel %vm79, %v78, 0.0
    %v82 = vadd.f32 %v80, %v81
    %83 = vadd.xlane.f32.xlu0 %v82
    %v84 = vpop.xlane.xlu0 %83
    %v85 = vrot.slane %v84, 4
    %v86 = vadd.f32 %v84, %v85
    %v87 = vrot.slane %v86, 2
    %v88 = vadd.f32 %v86, %v87
    %v89 = vrot.slane %v88, 1
    %v90 = vadd.f32 %v88, %v89
    %s91 = vtos %v90
    %v92 = vstv %s91
    %vm93 = vcmask 0
    %94 = vst.msk [vmem:[#allocation2] sm:$0x1] %vm93, %v92
    // Predicated region
    $region10: #{tpu_custom_call.1} parent=1 // pred_check
      _
    $region11: #{tpu_custom_call.1} parent=1 // pred_check_branch
      %96 = sbr.rel (0) target = $region13
    $region12: #{tpu_custom_call.1} parent=1 // pred_region
      %98 = vsyncadd [#allocation3], 0
      %s100 = sshll.u32 [#allocation2], 4
      %s101 = int_to_ptr.vmem [resolvable:$true] %s100
      %s102 = sshll.u32 %s2, 4
      %s103 = int_to_ptr.hbm [resolvable:$true] %s102
      %105 = dma.vmem_to_hbm [thread:$0]  %s101, 16, %s103, [#allocation3]
    $region13: #{tpu_custom_call.1} parent=1 // pred_fallthru
      _
    // Predicated region
    $region14: #{tpu_custom_call.1} parent=1 // pred_check
      _
    $region15: #{tpu_custom_call.1} parent=1 // pred_check_branch
      %107 = sbr.rel (0) target = $region17
    $region16: #{tpu_custom_call.1} parent=1 // pred_region
      %109 = dma.done [#allocation3], 16
    $region17: #{tpu_custom_call.1} parent=1 // pred_fallthru
      _
    %110 = vsyncpa [#allocation3], 1

</llo_original>
